<compile_context>
chip_gen: v7x
topology: tpu7x:2x2x1
jax: 0.10.0
libtpu: 0.0.40
codegen_flags: <defaults>
</compile_context>

<pallas_src>
import functools

import jax
import jax.numpy as jnp
import numpy as np
from jax.experimental import pallas as pl
from jax.experimental.pallas import tpu as pltpu

# ---------------- hyperparameters (the module's kwargs) ----------------
BATCH = 8
LATENT_DIM = 16
LAYERS_WIDTH = 128
ITEM_DIM = 64
DEPTH = 4                       # -> DEPTH - 2 = 2 hidden layers
NUM_HIDDEN = DEPTH - 2
OUT_PAD = 128                   # ITEM_DIM rounded up to a lane-dense 128


def _round_up(x, m):
    return -(-x // m) * m


# ---------------------------- kernel body ------------------------------
def decoder_kernel(num_hidden,
                   code_ref, w_in_ref, b_in_ref,
                   w_hid_ref, b_hid_ref,
                   w_out_ref, b_out_ref,
                   out_ref):
    # input layer: bf16 operands on the MXU, f32 accumulate, f32 bias + ReLU
    h = jnp.dot(code_ref[...], w_in_ref[...],
                preferred_element_type=jnp.float32) + b_in_ref[...]
    h = jnp.maximum(h, 0.0)

    # hidden layers (static unroll; weights stacked along axis 0, resident in VMEM)
    for i in range(num_hidden):
        h = jnp.dot(h.astype(jnp.bfloat16), w_hid_ref[i],
                    preferred_element_type=jnp.float32) + b_hid_ref[i]
        h = jnp.maximum(h, 0.0)

    # output layer (+ self.activate, as in Decoder.forward); 128-wide, lane-dense store
    y = jnp.dot(h.astype(jnp.bfloat16), w_out_ref[...],
                preferred_element_type=jnp.float32) + b_out_ref[...]
    out_ref[...] = jnp.maximum(y, 0.0).astype(out_ref.dtype)


# ----------------------------- wrapper ---------------------------------
def decoder_forward(code, params, *, tm=128):
    w_in, b_in, w_hid, b_hid, w_out, b_out = params
    batch = code.shape[0]

    # bf16 operands for the MXU; biases stay f32 (added to the f32 accumulator)
    code_bf = code.astype(jnp.bfloat16)
    w_in_bf = w_in.astype(jnp.bfloat16)
    w_hid_bf = w_hid.astype(jnp.bfloat16)

    # lane-dense output: pad the 64-wide output layer to 128 zero-filled columns
    w_out_p = jnp.zeros((LAYERS_WIDTH, OUT_PAD), jnp.bfloat16)
    w_out_p = w_out_p.at[:, :ITEM_DIM].set(w_out.astype(jnp.bfloat16))
    b_out_p = jnp.zeros((1, OUT_PAD), jnp.float32).at[:, :ITEM_DIM].set(b_out)

    # batch tiling: tile rows by `tm` (<=128), pad batch up to a multiple of it
    tm = int(min(tm, max(8, _round_up(batch, 8))))
    padded = _round_up(batch, tm)
    if padded != batch:
        code_bf = jnp.pad(code_bf, ((0, padded - batch), (0, 0)))
    grid = (padded // tm,)

    kernel = functools.partial(decoder_kernel, NUM_HIDDEN)

    def const_spec(shape):
        # full-array block, same block at every grid step -> stays resident in VMEM
        return pl.BlockSpec(shape, lambda i: tuple(0 for _ in shape))

    out = pl.pallas_call(
        kernel,
        out_shape=jax.ShapeDtypeStruct((padded, OUT_PAD), jnp.float32),
        grid=grid,
        in_specs=[
            pl.BlockSpec((tm, LATENT_DIM), lambda i: (i, 0)),   # streamed activations
            const_spec(w_in_bf.shape),
            const_spec(b_in.shape),
            const_spec(w_hid_bf.shape),
            const_spec(b_hid.shape),
            const_spec(w_out_p.shape),
            const_spec(b_out_p.shape),
        ],
        out_specs=pl.BlockSpec((tm, OUT_PAD), lambda i: (i, 0)),
        compiler_params=pltpu.CompilerParams(
            dimension_semantics=("parallel",)),   # megacore-split the batch tiles
    )(code_bf, w_in_bf, b_in, w_hid_bf, b_hid, w_out_p, b_out_p)

    # strip batch padding and the lane padding back to the module's item_dim
    return out[:batch, :ITEM_DIM]


# ------------------------ deterministic params --------------------------
def init_params(key):
    ks = jax.random.split(key, 6)

    def linear(k, fan_in, fan_out):
        # PyTorch-style uniform(-1/sqrt(fan_in), 1/sqrt(fan_in))
        bound = 1.0 / np.sqrt(fan_in)
        kw, kb = jax.random.split(k)
        w = jax.random.uniform(kw, (fan_in, fan_out), jnp.float32, -bound, bound)
        b = jax.random.uniform(kb, (1, fan_out), jnp.float32, -bound, bound)
        return w, b

    w_in, b_in = linear(ks[0], LATENT_DIM, LAYERS_WIDTH)

    w_hs, b_hs = [], []
    for i in range(NUM_HIDDEN):
        w, b = linear(ks[1 + i], LAYERS_WIDTH, LAYERS_WIDTH)
        w_hs.append(w)
        b_hs.append(b)
    w_hid = jnp.stack(w_hs, axis=0)                 # (NUM_HIDDEN, W, W)
    b_hid = jnp.stack(b_hs, axis=0)                 # (NUM_HIDDEN, 1, W)

    w_out, b_out = linear(ks[5], LAYERS_WIDTH, ITEM_DIM)
    return w_in, b_in, w_hid, b_hid, w_out, b_out


# ------------------------- pure-JAX reference ---------------------------
def decoder_reference(code, params):
    w_in, b_in, w_hid, b_hid, w_out, b_out = params
    h = jnp.maximum(code @ w_in + b_in, 0.0)
    for i in range(NUM_HIDDEN):
        h = jnp.maximum(h @ w_hid[i] + b_hid[i], 0.0)
    # divide_output_layer=False: single output layer, then self.activate, glue=concat
    return jnp.maximum(h @ w_out + b_out, 0.0)


if __name__ == "__main__":
    key = jax.random.PRNGKey(0)
    k_code, k_params = jax.random.split(key)

    code = jax.random.normal(k_code, (BATCH, LATENT_DIM), jnp.float32)
    params = init_params(k_params)

    out = decoder_forward(code, params)
    out = jax.block_until_ready(out)

    ref = decoder_reference(code, params)
    # tolerance loosened for bf16 MXU operands (f32 accumulation)
    np.testing.assert_allclose(np.asarray(out), np.asarray(ref),
                               rtol=5e-2, atol=5e-2)

    print("KERNEL_OK")
</pallas_src>

<mosaic_0001>
module attributes {stable_mosaic.version = 11 : i64} {
  func.func @decoder_kernel(%arg0: i32, %arg1: memref<8x16xbf16, #tpu.memory_space<vmem>>, %arg2: memref<16x128xbf16, #tpu.memory_space<vmem>>, %arg3: memref<1x128xf32, #tpu.memory_space<vmem>>, %arg4: memref<2x128x128xbf16, #tpu.memory_space<vmem>>, %arg5: memref<2x1x128xf32, #tpu.memory_space<vmem>>, %arg6: memref<128x128xbf16, #tpu.memory_space<vmem>>, %arg7: memref<1x128xf32, #tpu.memory_space<vmem>>, %arg8: memref<8x128xf32, #tpu.memory_space<vmem>>) attributes {dimension_semantics = [#tpu.dimension_semantics<parallel>], iteration_bounds = array<i64: 1>, scalar_prefetch = 0 : i64, scratch_operands = 0 : i64, tpu.core_type = #tpu.core_type<tc>, window_params = [{transform_indices = @transform_0, window_bounds = array<i64: 8, 16>}, {pipeline_mode = #tpu.pipeline_mode<synchronous>, transform_indices = @transform_1, window_bounds = array<i64: 16, 128>}, {pipeline_mode = #tpu.pipeline_mode<synchronous>, transform_indices = @transform_2, window_bounds = array<i64: 1, 128>}, {pipeline_mode = #tpu.pipeline_mode<synchronous>, transform_indices = @transform_3, window_bounds = array<i64: 2, 128, 128>}, {pipeline_mode = #tpu.pipeline_mode<synchronous>, transform_indices = @transform_4, window_bounds = array<i64: 2, 1, 128>}, {pipeline_mode = #tpu.pipeline_mode<synchronous>, transform_indices = @transform_5, window_bounds = array<i64: 128, 128>}, {pipeline_mode = #tpu.pipeline_mode<synchronous>, transform_indices = @transform_6, window_bounds = array<i64: 1, 128>}, {transform_indices = @transform_7, window_bounds = array<i64: 8, 128>}]} {
    %c0 = arith.constant 0 : index
    %c0_0 = arith.constant 0 : index
    %0 = vector.load %arg1[%c0, %c0_0] : memref<8x16xbf16, #tpu.memory_space<vmem>>, vector<8x16xbf16>
    %c0_1 = arith.constant 0 : index
    %c0_2 = arith.constant 0 : index
    %1 = vector.load %arg2[%c0_1, %c0_2] : memref<16x128xbf16, #tpu.memory_space<vmem>>, vector<16x128xbf16>
    %cst = arith.constant dense<0.000000e+00> : vector<8x128xf32>
    %2 = tpu.matmul %0, %1, %cst {dimension_numbers = #tpu.dot_dimension_numbers<[1], [0], [0], [1], [0, 0, 1, 1], [], []>} : vector<8x16xbf16>, vector<16x128xbf16>, vector<8x128xf32> -> vector<8x128xf32>
    %c0_3 = arith.constant 0 : index
    %c0_4 = arith.constant 0 : index
    %3 = vector.load %arg3[%c0_3, %c0_4] : memref<1x128xf32, #tpu.memory_space<vmem>>, vector<1x128xf32>
    %4 = vector.broadcast %3 : vector<1x128xf32> to vector<8x128xf32>
    %5 = arith.addf %2, %4 : vector<8x128xf32>
    %cst_5 = arith.constant 0.000000e+00 : f32
    %6 = vector.broadcast %cst_5 : f32 to vector<8x128xf32>
    %7 = arith.maximumf %5, %6 : vector<8x128xf32>
    %8 = arith.truncf %7 : vector<8x128xf32> to vector<8x128xbf16>
    %c0_6 = arith.constant 0 : index
    %c0_7 = arith.constant 0 : index
    %c0_8 = arith.constant 0 : index
    %9 = vector.load %arg4[%c0_6, %c0_7, %c0_8] : memref<2x128x128xbf16, #tpu.memory_space<vmem>>, vector<1x128x128xbf16>
    %10 = vector.shape_cast %9 : vector<1x128x128xbf16> to vector<128x128xbf16>
    %cst_9 = arith.constant dense<0.000000e+00> : vector<8x128xf32>
    %11 = tpu.matmul %8, %10, %cst_9 {dimension_numbers = #tpu.dot_dimension_numbers<[1], [0], [0], [1], [0, 0, 1, 1], [], []>} : vector<8x128xbf16>, vector<128x128xbf16>, vector<8x128xf32> -> vector<8x128xf32>
    %c0_10 = arith.constant 0 : index
    %c0_11 = arith.constant 0 : index
    %c0_12 = arith.constant 0 : index
    %12 = vector.load %arg5[%c0_10, %c0_11, %c0_12] : memref<2x1x128xf32, #tpu.memory_space<vmem>>, vector<1x1x128xf32>
    %13 = vector.shape_cast %12 : vector<1x1x128xf32> to vector<1x128xf32>
    %14 = vector.broadcast %13 : vector<1x128xf32> to vector<8x128xf32>
    %15 = arith.addf %11, %14 : vector<8x128xf32>
    %cst_13 = arith.constant 0.000000e+00 : f32
    %16 = vector.broadcast %cst_13 : f32 to vector<8x128xf32>
    %17 = arith.maximumf %15, %16 : vector<8x128xf32>
    %18 = arith.truncf %17 : vector<8x128xf32> to vector<8x128xbf16>
    %c1 = arith.constant 1 : index
    %c0_14 = arith.constant 0 : index
    %c0_15 = arith.constant 0 : index
    %19 = vector.load %arg4[%c1, %c0_14, %c0_15] : memref<2x128x128xbf16, #tpu.memory_space<vmem>>, vector<1x128x128xbf16>
    %20 = vector.shape_cast %19 : vector<1x128x128xbf16> to vector<128x128xbf16>
    %cst_16 = arith.constant dense<0.000000e+00> : vector<8x128xf32>
    %21 = tpu.matmul %18, %20, %cst_16 {dimension_numbers = #tpu.dot_dimension_numbers<[1], [0], [0], [1], [0, 0, 1, 1], [], []>} : vector<8x128xbf16>, vector<128x128xbf16>, vector<8x128xf32> -> vector<8x128xf32>
    %c1_17 = arith.constant 1 : index
    %c0_18 = arith.constant 0 : index
    %c0_19 = arith.constant 0 : index
    %22 = vector.load %arg5[%c1_17, %c0_18, %c0_19] : memref<2x1x128xf32, #tpu.memory_space<vmem>>, vector<1x1x128xf32>
    %23 = vector.shape_cast %22 : vector<1x1x128xf32> to vector<1x128xf32>
    %24 = vector.broadcast %23 : vector<1x128xf32> to vector<8x128xf32>
    %25 = arith.addf %21, %24 : vector<8x128xf32>
    %cst_20 = arith.constant 0.000000e+00 : f32
    %26 = vector.broadcast %cst_20 : f32 to vector<8x128xf32>
    %27 = arith.maximumf %25, %26 : vector<8x128xf32>
    %28 = arith.truncf %27 : vector<8x128xf32> to vector<8x128xbf16>
    %c0_21 = arith.constant 0 : index
    %c0_22 = arith.constant 0 : index
    %29 = vector.load %arg6[%c0_21, %c0_22] : memref<128x128xbf16, #tpu.memory_space<vmem>>, vector<128x128xbf16>
    %cst_23 = arith.constant dense<0.000000e+00> : vector<8x128xf32>
    %30 = tpu.matmul %28, %29, %cst_23 {dimension_numbers = #tpu.dot_dimension_numbers<[1], [0], [0], [1], [0, 0, 1, 1], [], []>} : vector<8x128xbf16>, vector<128x128xbf16>, vector<8x128xf32> -> vector<8x128xf32>
    %c0_24 = arith.constant 0 : index
    %c0_25 = arith.constant 0 : index
    %31 = vector.load %arg7[%c0_24, %c0_25] : memref<1x128xf32, #tpu.memory_space<vmem>>, vector<1x128xf32>
    %32 = vector.broadcast %31 : vector<1x128xf32> to vector<8x128xf32>
    %33 = arith.addf %30, %32 : vector<8x128xf32>
    %cst_26 = arith.constant 0.000000e+00 : f32
    %34 = vector.broadcast %cst_26 : f32 to vector<8x128xf32>
    %35 = arith.maximumf %33, %34 : vector<8x128xf32>
    %c0_27 = arith.constant 0 : index
    %c0_28 = arith.constant 0 : index
    %36 = vector.load %arg8[%c0_27, %c0_28] : memref<8x128xf32, #tpu.memory_space<vmem>>, vector<8x128xf32>
    tpu.vector_store %arg8[%c0_27, %c0_28], %35 {strides = array<i32>} : memref<8x128xf32, #tpu.memory_space<vmem>>, vector<8x128xf32>,
    return
  }
  func.func @transform_0(%arg0: i32) -> (i32, i32) {
    %c0_i32 = arith.constant 0 : i32
    %c0_i32_0 = arith.constant 0 : i32
    return %arg0, %c0_i32 : i32, i32
  }
  func.func @transform_1(%arg0: i32) -> (i32, i32) {
    %c0_i32 = arith.constant 0 : i32
    %c0_i32_0 = arith.constant 0 : i32
    %c0_i32_1 = arith.constant 0 : i32
    return %c0_i32, %c0_i32_0 : i32, i32
  }
  func.func @transform_2(%arg0: i32) -> (i32, i32) {
    %c0_i32 = arith.constant 0 : i32
    %c0_i32_0 = arith.constant 0 : i32
    %c0_i32_1 = arith.constant 0 : i32
    return %c0_i32, %c0_i32_0 : i32, i32
  }
  func.func @transform_3(%arg0: i32) -> (i32, i32, i32) {
    %c0_i32 = arith.constant 0 : i32
    %c0_i32_0 = arith.constant 0 : i32
    %c0_i32_1 = arith.constant 0 : i32
    %c0_i32_2 = arith.constant 0 : i32
    return %c0_i32, %c0_i32_0, %c0_i32_1 : i32, i32, i32
  }
  func.func @transform_4(%arg0: i32) -> (i32, i32, i32) {
    %c0_i32 = arith.constant 0 : i32
    %c0_i32_0 = arith.constant 0 : i32
    %c0_i32_1 = arith.constant 0 : i32
    %c0_i32_2 = arith.constant 0 : i32
    return %c0_i32, %c0_i32_0, %c0_i32_1 : i32, i32, i32
  }
  func.func @transform_5(%arg0: i32) -> (i32, i32) {
    %c0_i32 = arith.constant 0 : i32
    %c0_i32_0 = arith.constant 0 : i32
    %c0_i32_1 = arith.constant 0 : i32
    return %c0_i32, %c0_i32_0 : i32, i32
  }
  func.func @transform_6(%arg0: i32) -> (i32, i32) {
    %c0_i32 = arith.constant 0 : i32
    %c0_i32_0 = arith.constant 0 : i32
    %c0_i32_1 = arith.constant 0 : i32
    return %c0_i32, %c0_i32_0 : i32, i32
  }
  func.func @transform_7(%arg0: i32) -> (i32, i32) {
    %c0_i32 = arith.constant 0 : i32
    %c0_i32_0 = arith.constant 0 : i32
    return %arg0, %c0_i32 : i32, i32
  }
}

</mosaic_0001>

<llo_original>
// kernel: tpu_custom_call.1
$region0: #{tpu_custom_call.1}
  #allocation0 [shape = 'u32[]', space=smem, size = 0x4, offset = 0x4, fixed_abs, tag = 'smem constant byte address 0x4 - core index']
  #allocation1 [shape = 'u32[144,128]{1,0:T(1,128)}', space=vmem, size = 0x12000, scoped, tag = 'internal scratch']
  %s0 = inlined_call_operand.hbm [shape: bf16[8,16], index: 0, kind: input, shape index: {}]
  %s1 = inlined_call_operand.hbm [shape: bf16[16,128], index: 1, kind: input, shape index: {}]
  %s2 = inlined_call_operand.vmem [shape: f32[1,128], index: 2, kind: input, shape index: {}]
  %s3 = inlined_call_operand.hbm [shape: bf16[2,128,128], index: 3, kind: input, shape index: {}]
  %s4 = inlined_call_operand.vmem [shape: f32[2,1,128], index: 4, kind: input, shape index: {}]
  %s5 = inlined_call_operand.hbm [shape: bf16[128,128], index: 5, kind: input, shape index: {}]
  %s6 = inlined_call_operand.vmem [shape: f32[1,128], index: 6, kind: input, shape index: {}]
  %s7 = inlined_call_operand.hbm [shape: f32[8,128], index: 7, kind: output, shape index: {}]
  %s8 = sld [smem:[#allocation0]]
  $region54: #{tpu_custom_call.1} parent=0
    _
  %s10 = ssub.s32 1, %s8
  %s11 = scalar_select 0, %s10, %s8
  $region1: #{tpu_custom_call.1} parent=0
    #allocation2 [shape = 'u8[2048]{0}', space=vmem, size = 0x800, scoped, tag = 'input window, operand 0, single buffered']
    #allocation3 [shape = 's32[1]{0}', space=sflag, size = 0x4, scoped, tag = 'scoped memory for tpu_custom_call.1']
    #allocation4 [shape = 's32[1]{0}', space=sflag, size = 0x4, scoped, tag = 'scoped memory for tpu_custom_call.1']
    #allocation5 [shape = 'u8[4096]{0}', space=vmem, size = 0x1000, scoped, tag = 'input window, operand 1, single buffered']
    #allocation6 [shape = 's32[1]{0}', space=sflag, size = 0x4, scoped, tag = 'scoped memory for tpu_custom_call.1']
    #allocation7 [shape = 'u8[65536]{0}', space=vmem, size = 0x10000, scoped, tag = 'input window, operand 3, single buffered']
    #allocation8 [shape = 'u8[32768]{0}', space=vmem, size = 0x8000, scoped, tag = 'input window, operand 5, single buffered']
    #allocation9 [shape = 's32[1]{0}', space=sflag, size = 0x4, scoped, tag = 'scoped memory for tpu_custom_call.1']
    #allocation10 [shape = 'u8[4096]{0}', space=vmem, size = 0x1000, scoped, tag = 'output window, operand 0, single buffered']
    %12 = vsyncpa [#allocation3], 0
    %13 = vsyncpa [#allocation6], 0
    %14 = vsyncpa [#allocation9], 0
    %15 = vsyncpa [#allocation4], 0
    // Predicated region
    $region2: #{tpu_custom_call.1} parent=1 // pred_check
      _
    $region3: #{tpu_custom_call.1} parent=1 // pred_check_branch
      %17 = sbr.rel (0) target = $region5
    $region4: #{tpu_custom_call.1} parent=1 // pred_region
      %s19 = ssub.s32 64, 64
      %20 = vsyncadd [#allocation3], %s19
      %s22 = sshll.u32 [#allocation2], 4
      %s23 = int_to_ptr.vmem [resolvable:$true] %s22
      %25 = dma.hbm_to_vmem [thread:$0]  %s0, 64, %s23, [#allocation3]
    $region5: #{tpu_custom_call.1} parent=1 // pred_fallthru
      _
    // Predicated region
    $region6: #{tpu_custom_call.1} parent=1 // pred_check
      _
    $region7: #{tpu_custom_call.1} parent=1 // pred_check_branch
      %27 = sbr.rel (0) target = $region9
    $region8: #{tpu_custom_call.1} parent=1 // pred_region
      %s29 = ssub.s32 128, 128
      %30 = vsyncadd [#allocation6], %s29
      %s31 = sshll.u32 [#allocation5], 4
      %s32 = int_to_ptr.vmem [resolvable:$true] %s31
      %37 = dma.hbm_to_vmem [thread:$0]  %s1, 128, %s32, [#allocation6], 64, 64, 4
    $region9: #{tpu_custom_call.1} parent=1 // pred_fallthru
      _
    // Predicated region
    $region10: #{tpu_custom_call.1} parent=1 // pred_check
      _
    $region11: #{tpu_custom_call.1} parent=1 // pred_check_branch
      %39 = sbr.rel (0) target = $region13
    $region12: #{tpu_custom_call.1} parent=1 // pred_region
      _
    $region13: #{tpu_custom_call.1} parent=1 // pred_fallthru
      _
    // Predicated region
    $region14: #{tpu_custom_call.1} parent=1 // pred_check
      _
    $region15: #{tpu_custom_call.1} parent=1 // pred_check_branch
      %41 = sbr.rel (0) target = $region17
    $region16: #{tpu_custom_call.1} parent=1 // pred_region
      %s43 = ssub.s32 2048, 2048
      %44 = vsyncadd [#allocation6], %s43
      %s45 = sshll.u32 [#allocation7], 4
      %s46 = int_to_ptr.vmem [resolvable:$true] %s45
      %51 = dma.hbm_to_vmem [thread:$0]  %s3, 2048, %s46, [#allocation6], 64, 64, 4
    $region17: #{tpu_custom_call.1} parent=1 // pred_fallthru
      _
    // Predicated region
    $region18: #{tpu_custom_call.1} parent=1 // pred_check
      _
    $region19: #{tpu_custom_call.1} parent=1 // pred_check_branch
      %53 = sbr.rel (0) target = $region21
    $region20: #{tpu_custom_call.1} parent=1 // pred_region
      _
    $region21: #{tpu_custom_call.1} parent=1 // pred_fallthru
      _
    // Predicated region
    $region22: #{tpu_custom_call.1} parent=1 // pred_check
      _
    $region23: #{tpu_custom_call.1} parent=1 // pred_check_branch
      %55 = sbr.rel (0) target = $region25
    $region24: #{tpu_custom_call.1} parent=1 // pred_region
      %s57 = ssub.s32 1024, 1024
      %58 = vsyncadd [#allocation9], %s57
      %s59 = sshll.u32 [#allocation8], 4
      %s60 = int_to_ptr.vmem [resolvable:$true] %s59
      %65 = dma.hbm_to_vmem [thread:$0]  %s5, 1024, %s60, [#allocation9], 64, 64, 4
    $region25: #{tpu_custom_call.1} parent=1 // pred_fallthru
      _
    // Predicated region
    $region26: #{tpu_custom_call.1} parent=1 // pred_check
      _
    $region27: #{tpu_custom_call.1} parent=1 // pred_check_branch
      %67 = sbr.rel (0) target = $region29
    $region28: #{tpu_custom_call.1} parent=1 // pred_region
      _
    $region29: #{tpu_custom_call.1} parent=1 // pred_fallthru
      _
    // Predicated region
    $region30: #{tpu_custom_call.1} parent=1 // pred_check
      _
    $region31: #{tpu_custom_call.1} parent=1 // pred_check_branch
      %69 = sbr.rel (0) target = $region33
    $region32: #{tpu_custom_call.1} parent=1 // pred_region
      %70 = dma.done [#allocation3], 64
    $region33: #{tpu_custom_call.1} parent=1 // pred_fallthru
      _
    // Predicated region
    $region34: #{tpu_custom_call.1} parent=1 // pred_check
      _
    $region35: #{tpu_custom_call.1} parent=1 // pred_check_branch
      %72 = sbr.rel (0) target = $region37
    $region36: #{tpu_custom_call.1} parent=1 // pred_region
      %73 = dma.done [#allocation6], 128
    $region37: #{tpu_custom_call.1} parent=1 // pred_fallthru
      _
    // Predicated region
    $region38: #{tpu_custom_call.1} parent=1 // pred_check
      _
    $region39: #{tpu_custom_call.1} parent=1 // pred_check_branch
      %75 = sbr.rel (0) target = $region41
    $region40: #{tpu_custom_call.1} parent=1 // pred_region
      %76 = dma.done [#allocation6], 2048
    $region41: #{tpu_custom_call.1} parent=1 // pred_fallthru
      _
    // Predicated region
    $region42: #{tpu_custom_call.1} parent=1 // pred_check
      _
    $region43: #{tpu_custom_call.1} parent=1 // pred_check_branch
      %78 = sbr.rel (0) target = $region45
    $region44: #{tpu_custom_call.1} parent=1 // pred_region
      %79 = dma.done [#allocation9], 1024
    $region45: #{tpu_custom_call.1} parent=1 // pred_fallthru
      _
    %v81 = vld [vmem:[#allocation2] sm:$0xf]
    %v82 = vld [vmem:[#allocation5] sm:$0xf]
    %v83 = vld [vmem:[#allocation5 + $0x4] sm:$0xf]
    %v84 = vld [vmem:[%s2] sm:$0x1]
    %v86 = vlaneseq
    %v87 = vshrl.u32 %v86, 7
    %v88 = vsub.s32 0, %v87
    %v89 = vrot.slane %v84, %v88
    %v93 = vunpack.c.l.b16 %v82
    %v94 = vunpack.c.l.b16 %v83
    %v95 = vpack.c.b16 %v94, %v93
    %vm97 = vcmask 130048
    %v99 = vsel %vm97, %v81, 0
    %101 = vmatprep.subr.bf16.mxu0 0
    %102 = vmatpush1.bf16.msra.mxu0 %v95
    %103 = vmatprep.subr.bf16.mxu0 0
    %104 = vmatpush1.bf16.msra.mxu0 0
    %105 = vmatprep.subr.bf16.mxu0 0
    %106 = vmatpush1.bf16.msra.mxu0 0
    %107 = vmatprep.subr.bf16.mxu0 0
    %108 = vmatpush1.bf16.msra.mxu0 0
    %109 = vmatprep.subr.bf16.mxu0 0
    %110 = vmatpush1.bf16.msra.mxu0 0
    %111 = vmatprep.subr.bf16.mxu0 0
    %112 = vmatpush1.bf16.msra.mxu0 0
    %113 = vmatprep.subr.bf16.mxu0 0
    %114 = vmatpush1.bf16.msra.mxu0 0
    %115 = vmatprep.subr.bf16.mxu0 0
    %116 = vmatpush1.bf16.msra.mxu0 0
    %117 = vmatprep.subr.bf16.mxu0 0
    %118 = vmatpush1.bf16.msra.mxu0 0
    %119 = vmatprep.subr.bf16.mxu0 0
    %120 = vmatpush1.bf16.msra.mxu0 0
    %121 = vmatprep.subr.bf16.mxu0 0
    %122 = vmatpush1.bf16.msra.mxu0 0
    %123 = vmatprep.subr.bf16.mxu0 0
    %124 = vmatpush1.bf16.msra.mxu0 0
    %125 = vmatprep.subr.bf16.mxu0 0
    %126 = vmatpush1.bf16.msra.mxu0 0
    %127 = vmatprep.subr.bf16.mxu0 0
    %128 = vmatpush1.bf16.msra.mxu0 0
    %129 = vmatprep.subr.bf16.mxu0 0
    %130 = vmatpush1.bf16.msra.mxu0 0
    %131 = vmatprep.subr.bf16.mxu0 0
    %132 = vmatpush1.bf16.msra.mxu0 0
    %133 = vmatprep.mubr.bf16.mxu0 0
    %134 = vmatmul.mubr.bf16.gmra.mrb[0].mxu0 %v99
    %v135 = vpop.f32.mrb[0].mxu0
    %v136 = vadd.f32 %v89, %v135
    %v137 = vpop.f32.mrb[0].mxu0
    %v138 = vpop.f32.mrb[0].mxu0
    %v139 = vpop.f32.mrb[0].mxu0
    %140 = vdwg.mxu0
    %v141 = vmax.f32 %v136, 0.0
    %v142 = vpack.c.bf16 %v141, %v141
    %v143 = vld [vmem:[#allocation7] sm:$0xf]
    %v144 = vld [vmem:[#allocation7 + $0x4] sm:$0xf]
    %v145 = vld [vmem:[#allocation7 + $0x8] sm:$0xf]
    %v146 = vld [vmem:[#allocation7 + $0xc] sm:$0xf]
    %v147 = vld [vmem:[#allocation7 + $0x10] sm:$0xf]
    %v148 = vld [vmem:[#allocation7 + $0x14] sm:$0xf]
    %v149 = vld [vmem:[#allocation7 + $0x18] sm:$0xf]
    %v150 = vld [vmem:[#allocation7 + $0x1c] sm:$0xf]
    %v151 = vld [vmem:[#allocation7 + $0x20] sm:$0xf]
    %v152 = vld [vmem:[#allocation7 + $0x24] sm:$0xf]
    %v153 = vld [vmem:[#allocation7 + $0x28] sm:$0xf]
    %v154 = vld [vmem:[#allocation7 + $0x2c] sm:$0xf]
    %v155 = vld [vmem:[#allocation7 + $0x30] sm:$0xf]
    %v156 = vld [vmem:[#allocation7 + $0x34] sm:$0xf]
    %v157 = vld [vmem:[#allocation7 + $0x38] sm:$0xf]
    %v158 = vld [vmem:[#allocation7 + $0x3c] sm:$0xf]
    %v159 = vld [vmem:[%s4] sm:$0x1]
    %v161 = vlaneseq
    %v162 = vshrl.u32 %v161, 7
    %v163 = vsub.s32 0, %v162
    %v164 = vrot.slane %v159, %v163
    %v182 = vunpack.c.l.b16 %v143
    %v183 = vunpack.c.l.b16 %v144
    %v184 = vunpack.c.l.b16 %v145
    %v185 = vunpack.c.l.b16 %v146
    %v186 = vunpack.c.l.b16 %v147
    %v187 = vunpack.c.l.b16 %v148
    %v188 = vunpack.c.l.b16 %v149
    %v189 = vunpack.c.l.b16 %v150
    %v190 = vunpack.c.l.b16 %v151
    %v191 = vunpack.c.l.b16 %v152
    %v192 = vunpack.c.l.b16 %v153
    %v193 = vunpack.c.l.b16 %v154
    %v194 = vunpack.c.l.b16 %v155
    %v195 = vunpack.c.l.b16 %v156
    %v196 = vunpack.c.l.b16 %v157
    %v197 = vunpack.c.l.b16 %v158
    %v198 = vpack.c.b16 %v183, %v182
    %v199 = vpack.c.b16 %v185, %v184
    %v200 = vpack.c.b16 %v187, %v186
    %v201 = vpack.c.b16 %v189, %v188
    %v202 = vpack.c.b16 %v191, %v190
    %v203 = vpack.c.b16 %v193, %v192
    %v204 = vpack.c.b16 %v195, %v194
    %v205 = vpack.c.b16 %v197, %v196
    %214 = vmatprep.subr.bf16.mxu0 0
    %215 = vmatpush1.bf16.msra.mxu0 %v198
    %216 = vmatprep.subr.bf16.mxu0 0
    %217 = vmatpush1.bf16.msra.mxu0 %v199
    %218 = vmatprep.subr.bf16.mxu0 0
    %219 = vmatpush1.bf16.msra.mxu0 %v200
    %220 = vmatprep.subr.bf16.mxu0 0
    %221 = vmatpush1.bf16.msra.mxu0 %v201
    %222 = vmatprep.subr.bf16.mxu0 0
    %223 = vmatpush1.bf16.msra.mxu0 %v202
    %224 = vmatprep.subr.bf16.mxu0 0
    %225 = vmatpush1.bf16.msra.mxu0 %v203
    %226 = vmatprep.subr.bf16.mxu0 0
    %227 = vmatpush1.bf16.msra.mxu0 %v204
    %228 = vmatprep.subr.bf16.mxu0 0
    %229 = vmatpush1.bf16.msra.mxu0 %v205
    %230 = vmatprep.subr.bf16.mxu0 0
    %231 = vmatpush1.bf16.msra.mxu0 0
    %232 = vmatprep.subr.bf16.mxu0 0
    %233 = vmatpush1.bf16.msra.mxu0 0
    %234 = vmatprep.subr.bf16.mxu0 0
    %235 = vmatpush1.bf16.msra.mxu0 0
    %236 = vmatprep.subr.bf16.mxu0 0
    %237 = vmatpush1.bf16.msra.mxu0 0
    %238 = vmatprep.subr.bf16.mxu0 0
    %239 = vmatpush1.bf16.msra.mxu0 0
    %240 = vmatprep.subr.bf16.mxu0 0
    %241 = vmatpush1.bf16.msra.mxu0 0
    %242 = vmatprep.subr.bf16.mxu0 0
    %243 = vmatpush1.bf16.msra.mxu0 0
    %244 = vmatprep.subr.bf16.mxu0 0
    %245 = vmatpush1.bf16.msra.mxu0 0
    %246 = vmatprep.mubr.bf16.mxu0 0
    %247 = vmatmul.mubr.bf16.gmra.mrb[0].mxu0 %v142
    %v248 = vpop.f32.mrb[0].mxu0
    %v249 = vadd.f32 %v164, %v248
    %v250 = vpop.f32.mrb[0].mxu0
    %v251 = vpop.f32.mrb[0].mxu0
    %v252 = vpop.f32.mrb[0].mxu0
    %253 = vdwg.mxu0
    %v254 = vmax.f32 %v249, 0.0
    %v255 = vpack.c.bf16 %v254, %v254
    %s256 = scalar_lea.vmem [#allocation7], 64
    %v257 = vld [vmem:[%s256] sm:$0xf]
    %v258 = vld [vmem:[%s256 + $0x4] sm:$0xf]
    %v259 = vld [vmem:[%s256 + $0x8] sm:$0xf]
    %v260 = vld [vmem:[%s256 + $0xc] sm:$0xf]
    %v261 = vld [vmem:[%s256 + $0x10] sm:$0xf]
    %v262 = vld [vmem:[%s256 + $0x14] sm:$0xf]
    %v263 = vld [vmem:[%s256 + $0x18] sm:$0xf]
    %v264 = vld [vmem:[%s256 + $0x1c] sm:$0xf]
    %v265 = vld [vmem:[%s256 + $0x20] sm:$0xf]
    %v266 = vld [vmem:[%s256 + $0x24] sm:$0xf]
    %v267 = vld [vmem:[%s256 + $0x28] sm:$0xf]
    %v268 = vld [vmem:[%s256 + $0x2c] sm:$0xf]
    %v269 = vld [vmem:[%s256 + $0x30] sm:$0xf]
    %v270 = vld [vmem:[%s256 + $0x34] sm:$0xf]
    %v271 = vld [vmem:[%s256 + $0x38] sm:$0xf]
    %v272 = vld [vmem:[%s256 + $0x3c] sm:$0xf]
    %s273 = scalar_lea.vmem %s4, 1
    %v274 = vld [vmem:[%s273] sm:$0x1]
    %v276 = vlaneseq
    %v277 = vshrl.u32 %v276, 7
    %v278 = vsub.s32 0, %v277
    %v279 = vrot.slane %v274, %v278
    %v297 = vunpack.c.l.b16 %v257
    %v298 = vunpack.c.l.b16 %v258
    %v299 = vunpack.c.l.b16 %v259
    %v300 = vunpack.c.l.b16 %v260
    %v301 = vunpack.c.l.b16 %v261
    %v302 = vunpack.c.l.b16 %v262
    %v303 = vunpack.c.l.b16 %v263
    %v304 = vunpack.c.l.b16 %v264
    %v305 = vunpack.c.l.b16 %v265
    %v306 = vunpack.c.l.b16 %v266
    %v307 = vunpack.c.l.b16 %v267
    %v308 = vunpack.c.l.b16 %v268
    %v309 = vunpack.c.l.b16 %v269
    %v310 = vunpack.c.l.b16 %v270
    %v311 = vunpack.c.l.b16 %v271
    %v312 = vunpack.c.l.b16 %v272
    %v313 = vpack.c.b16 %v298, %v297
    %v314 = vpack.c.b16 %v300, %v299
    %v315 = vpack.c.b16 %v302, %v301
    %v316 = vpack.c.b16 %v304, %v303
    %v317 = vpack.c.b16 %v306, %v305
    %v318 = vpack.c.b16 %v308, %v307
    %v319 = vpack.c.b16 %v310, %v309
    %v320 = vpack.c.b16 %v312, %v311
    %329 = vmatprep.subr.bf16.mxu0 0
    %330 = vmatpush1.bf16.msra.mxu0 %v313
    %331 = vmatprep.subr.bf16.mxu0 0
    %332 = vmatpush1.bf16.msra.mxu0 %v314
    %333 = vmatprep.subr.bf16.mxu0 0
    %334 = vmatpush1.bf16.msra.mxu0 %v315
    %335 = vmatprep.subr.bf16.mxu0 0
    %336 = vmatpush1.bf16.msra.mxu0 %v316
    %337 = vmatprep.subr.bf16.mxu0 0
    %338 = vmatpush1.bf16.msra.mxu0 %v317
    %339 = vmatprep.subr.bf16.mxu0 0
    %340 = vmatpush1.bf16.msra.mxu0 %v318
    %341 = vmatprep.subr.bf16.mxu0 0
    %342 = vmatpush1.bf16.msra.mxu0 %v319
    %343 = vmatprep.subr.bf16.mxu0 0
    %344 = vmatpush1.bf16.msra.mxu0 %v320
    %345 = vmatprep.subr.bf16.mxu0 0
    %346 = vmatpush1.bf16.msra.mxu0 0
    %347 = vmatprep.subr.bf16.mxu0 0
    %348 = vmatpush1.bf16.msra.mxu0 0
    %349 = vmatprep.subr.bf16.mxu0 0
    %350 = vmatpush1.bf16.msra.mxu0 0
    %351 = vmatprep.subr.bf16.mxu0 0
    %352 = vmatpush1.bf16.msra.mxu0 0
    %353 = vmatprep.subr.bf16.mxu0 0
    %354 = vmatpush1.bf16.msra.mxu0 0
    %355 = vmatprep.subr.bf16.mxu0 0
    %356 = vmatpush1.bf16.msra.mxu0 0
    %357 = vmatprep.subr.bf16.mxu0 0
    %358 = vmatpush1.bf16.msra.mxu0 0
    %359 = vmatprep.subr.bf16.mxu0 0
    %360 = vmatpush1.bf16.msra.mxu0 0
    %361 = vmatprep.mubr.bf16.mxu0 0
    %362 = vmatmul.mubr.bf16.gmra.mrb[0].mxu0 %v255
    %v363 = vpop.f32.mrb[0].mxu0
    %v364 = vadd.f32 %v279, %v363
    %v365 = vpop.f32.mrb[0].mxu0
    %v366 = vpop.f32.mrb[0].mxu0
    %v367 = vpop.f32.mrb[0].mxu0
    %368 = vdwg.mxu0
    %v369 = vmax.f32 %v364, 0.0
    %v370 = vpack.c.bf16 %v369, %v369
    %v371 = vld [vmem:[#allocation8] sm:$0xf]
    %v372 = vld [vmem:[#allocation8 + $0x4] sm:$0xf]
    %v373 = vld [vmem:[#allocation8 + $0x8] sm:$0xf]
    %v374 = vld [vmem:[#allocation8 + $0xc] sm:$0xf]
    %v375 = vld [vmem:[#allocation8 + $0x10] sm:$0xf]
    %v376 = vld [vmem:[#allocation8 + $0x14] sm:$0xf]
    %v377 = vld [vmem:[#allocation8 + $0x18] sm:$0xf]
    %v378 = vld [vmem:[#allocation8 + $0x1c] sm:$0xf]
    %v379 = vld [vmem:[#allocation8 + $0x20] sm:$0xf]
    %v380 = vld [vmem:[#allocation8 + $0x24] sm:$0xf]
    %v381 = vld [vmem:[#allocation8 + $0x28] sm:$0xf]
    %v382 = vld [vmem:[#allocation8 + $0x2c] sm:$0xf]
    %v383 = vld [vmem:[#allocation8 + $0x30] sm:$0xf]
    %v384 = vld [vmem:[#allocation8 + $0x34] sm:$0xf]
    %v385 = vld [vmem:[#allocation8 + $0x38] sm:$0xf]
    %v386 = vld [vmem:[#allocation8 + $0x3c] sm:$0xf]
    %v387 = vld [vmem:[%s6] sm:$0x1]
    %v389 = vlaneseq
    %v390 = vshrl.u32 %v389, 7
    %v391 = vsub.s32 0, %v390
    %v392 = vrot.slane %v387, %v391
    %v410 = vunpack.c.l.b16 %v371
    %v411 = vunpack.c.l.b16 %v372
    %v412 = vunpack.c.l.b16 %v373
    %v413 = vunpack.c.l.b16 %v374
    %v414 = vunpack.c.l.b16 %v375
    %v415 = vunpack.c.l.b16 %v376
    %v416 = vunpack.c.l.b16 %v377
    %v417 = vunpack.c.l.b16 %v378
    %v418 = vunpack.c.l.b16 %v379
    %v419 = vunpack.c.l.b16 %v380
    %v420 = vunpack.c.l.b16 %v381
    %v421 = vunpack.c.l.b16 %v382
    %v422 = vunpack.c.l.b16 %v383
    %v423 = vunpack.c.l.b16 %v384
    %v424 = vunpack.c.l.b16 %v385
    %v425 = vunpack.c.l.b16 %v386
    %v426 = vpack.c.b16 %v411, %v410
    %v427 = vpack.c.b16 %v413, %v412
    %v428 = vpack.c.b16 %v415, %v414
    %v429 = vpack.c.b16 %v417, %v416
    %v430 = vpack.c.b16 %v419, %v418
    %v431 = vpack.c.b16 %v421, %v420
    %v432 = vpack.c.b16 %v423, %v422
    %v433 = vpack.c.b16 %v425, %v424
    %442 = vmatprep.subr.bf16.mxu0 0
    %443 = vmatpush1.bf16.msra.mxu0 %v426
    %444 = vmatprep.subr.bf16.mxu0 0
    %445 = vmatpush1.bf16.msra.mxu0 %v427
    %446 = vmatprep.subr.bf16.mxu0 0
    %447 = vmatpush1.bf16.msra.mxu0 %v428
    %448 = vmatprep.subr.bf16.mxu0 0
    %449 = vmatpush1.bf16.msra.mxu0 %v429
    %450 = vmatprep.subr.bf16.mxu0 0
    %451 = vmatpush1.bf16.msra.mxu0 %v430
    %452 = vmatprep.subr.bf16.mxu0 0
    %453 = vmatpush1.bf16.msra.mxu0 %v431
    %454 = vmatprep.subr.bf16.mxu0 0
    %455 = vmatpush1.bf16.msra.mxu0 %v432
    %456 = vmatprep.subr.bf16.mxu0 0
    %457 = vmatpush1.bf16.msra.mxu0 %v433
    %458 = vmatprep.subr.bf16.mxu0 0
    %459 = vmatpush1.bf16.msra.mxu0 0
    %460 = vmatprep.subr.bf16.mxu0 0
    %461 = vmatpush1.bf16.msra.mxu0 0
    %462 = vmatprep.subr.bf16.mxu0 0
    %463 = vmatpush1.bf16.msra.mxu0 0
    %464 = vmatprep.subr.bf16.mxu0 0
    %465 = vmatpush1.bf16.msra.mxu0 0
    %466 = vmatprep.subr.bf16.mxu0 0
    %467 = vmatpush1.bf16.msra.mxu0 0
    %468 = vmatprep.subr.bf16.mxu0 0
    %469 = vmatpush1.bf16.msra.mxu0 0
    %470 = vmatprep.subr.bf16.mxu0 0
    %471 = vmatpush1.bf16.msra.mxu0 0
    %472 = vmatprep.subr.bf16.mxu0 0
    %473 = vmatpush1.bf16.msra.mxu0 0
    %474 = vmatprep.mubr.bf16.mxu0 0
    %475 = vmatmul.mubr.bf16.gmra.mrb[0].mxu0 %v370
    %v476 = vpop.f32.mrb[0].mxu0
    %v477 = vadd.f32 %v392, %v476
    %v478 = vpop.f32.mrb[0].mxu0
    %v479 = vpop.f32.mrb[0].mxu0
    %v480 = vpop.f32.mrb[0].mxu0
    %481 = vdwg.mxu0
    %v482 = vmax.f32 %v477, 0.0
    %483 = vst [vmem:[#allocation10] sm:$0xff] %v482
    // Predicated region
    $region46: #{tpu_custom_call.1} parent=1 // pred_check
      _
    $region47: #{tpu_custom_call.1} parent=1 // pred_check_branch
      %485 = sbr.rel (0) target = $region49
    $region48: #{tpu_custom_call.1} parent=1 // pred_region
      %s487 = ssub.s32 128, 128
      %488 = vsyncadd [#allocation4], %s487
      %s490 = sshll.u32 [#allocation10], 4
      %s491 = int_to_ptr.vmem [resolvable:$true] %s490
      %493 = dma.vmem_to_hbm [thread:$0]  %s491, 128, %s7, [#allocation4]
    $region49: #{tpu_custom_call.1} parent=1 // pred_fallthru
      _
    // Predicated region
    $region50: #{tpu_custom_call.1} parent=1 // pred_check
      _
    $region51: #{tpu_custom_call.1} parent=1 // pred_check_branch
      %495 = sbr.rel (0) target = $region53
    $region52: #{tpu_custom_call.1} parent=1 // pred_region
      %496 = dma.done [#allocation4], 128
    $region53: #{tpu_custom_call.1} parent=1 // pred_fallthru
      _
    %497 = vsyncpa [#allocation3], 1
    %498 = vsyncpa [#allocation6], 1
    %499 = vsyncpa [#allocation9], 1
    %500 = vsyncpa [#allocation4], 1

</llo_original>
